<compile_context>
chip_gen: v7x
topology: tpu7x:2x2x1
jax: 0.10.0
libtpu: 0.0.40
codegen_flags: <defaults>
</compile_context>

<pallas_src>
import jax
import jax.numpy as jnp
from jax.experimental import pallas as pl
from jax.experimental.pallas import tpu as pltpu


TL = 1024       # lanes per tile; 8 * TL constraints per grid step per core
NCORES = 2      # leading "parallel" axis: splits tiles across TCs on v7x;
                # runs serially (negligible overhead) on 1-TC v5e/v6e.
PACK_ROWS = 16  # 12 coord rows + p0 + p1 + typ(bits) + pose(bits)


def _make_kernel(nposes):
    """Kernel closure over the (static) number of poses."""

    def cnstr_kernel(packed_ref, out_ref):
        # out_ref: (1, nposes, 8, TL) lane-dense per-pose accumulator, resident
        # across grid axis 1 (index_map constant in j).  One block per core.
        @pl.when(pl.program_id(1) == 0)
        def _():
            out_ref[...] = jnp.zeros_like(out_ref)

        def row(r):
            # tile-aligned (8, TL) view of one packed quantity; no sublane shuffles
            return packed_ref[r]

        def dist(a, b):
            dx = row(3 * a + 0) - row(3 * b + 0)
            dy = row(3 * a + 1) - row(3 * b + 1)
            dz = row(3 * a + 2) - row(3 * b + 2)
            return jnp.sqrt(dx * dx + dy * dy + dz * dz)        # (8, TL), EUP sqrt

        d01 = dist(0, 1)
        d03 = dist(0, 3)

        p0 = row(12)                                            # (8, TL)
        p1 = row(13)                                            # (8, TL)
        typ = pltpu.bitcast(row(14), jnp.int32)                 # (8, TL)
        pose = pltpu.bitcast(row(15), jnp.int32)                # (8, TL)

        # constraint fn 0: harmonic distance  ((d - x0)/sd)^2
        sd = jnp.where(p1 != 0.0, p1, 1.0)   # guard div-by-0 (padding / bad params)
        t0 = (d01 - p0) / sd
        s0 = t0 * t0
        # constraint fn 1: flat-bottom harmonic  max(d - x0, 0)^2 * w
        t1 = jnp.maximum(d03 - p0, 0.0)
        s1 = t1 * t1 * p1

        # masked sum mirrors score_cnstrs: typ outside {0,1} (incl. padding -1) -> 0
        score = jnp.where(typ == 0, s0, 0.0) + jnp.where(typ == 1, s1, 0.0)

        # per-pose segment accumulate, kept lane-dense (pure VPU adds; no XLU,
        # no masked partial stores).  Final cross-lane reduce done in XLA.
        # TODO(synk): for large nposes, replace the per-pose one-hot with a
        # sorted-by-pose layout + scalar-prefetch per-tile pose ranges to keep
        # the accumulate cost O(TL) instead of O(nposes * TL).
        for p in range(nposes):
            out_ref[0, p] += jnp.where(pose == p, score, 0.0)

    return cnstr_kernel


def constraint_whole_pose_score(coords, block_coord_offset, constraint_atoms,
                                constraint_function_inds, constraint_params):
    """Index/gather glue in plain JAX; scoring + per-pose reduction in Pallas."""
    nposes, nblocks = block_coord_offset.shape
    n_cnstr = constraint_atoms.shape[0]

    pose_inds = constraint_atoms[:, :, 0]    # (N, 4)
    res_inds = constraint_atoms[:, :, 1]     # (N, 4)
    atom_inds = constraint_atoms[:, :, 2]    # (N, 4)

    # atom_global_indices = block offset + within-block atom index (module __init__)
    global_inds = block_coord_offset[pose_inds, res_inds] + atom_inds   # (N, 4)

    # gather directly in the kernel's (12, N) row layout (atom-major, xyz inner)
    pose_t = jnp.transpose(pose_inds)                   # (4, N)
    gidx_t = jnp.transpose(global_inds)                 # (4, N)
    ac4 = coords[pose_t, gidx_t].astype(jnp.float32)    # (4, N, 3)
    ac = jnp.transpose(ac4, (0, 2, 1)).reshape(12, n_cnstr)   # row = 3*atom + xyz

    # pad the constraint axis to a multiple of NCORES * 8 * TL
    chunk = NCORES * 8 * TL
    n_pad = ((n_cnstr + chunk - 1) // chunk) * chunk
    pad = n_pad - n_cnstr

    p0 = jnp.pad(constraint_params[:, 0].astype(jnp.float32), (0, pad))
    p1 = jnp.pad(constraint_params[:, 1].astype(jnp.float32), (0, pad),
                 constant_values=1.0)
    typ = jnp.pad(constraint_function_inds.astype(jnp.int32), (0, pad),
                  constant_values=-1)
    pose = jnp.pad(pose_inds[:, 0].astype(jnp.int32), (0, pad))
    ac = jnp.pad(ac, ((0, 0), (0, pad)))

    packed2d = jnp.concatenate(
        [ac,
         p0[None, :], p1[None, :],
         jax.lax.bitcast_convert_type(typ, jnp.float32)[None, :],
         jax.lax.bitcast_convert_type(pose, jnp.float32)[None, :]],
        axis=0)                                             # (16, n_pad) f32

    # constraint axis -> (8 sublanes, n_lanes lanes): full-vreg elementwise math
    n_lanes = n_pad // 8
    packed = packed2d.reshape(PACK_ROWS, 8, n_lanes)

    tiles_per_core = n_lanes // (NCORES * TL)

    out = pl.pallas_call(
        _make_kernel(nposes),
        out_shape=jax.ShapeDtypeStruct((NCORES, nposes, 8, TL), jnp.float32),
        grid_spec=pltpu.PrefetchScalarGridSpec(
            num_scalar_prefetch=0,
            grid=(NCORES, tiles_per_core),
            in_specs=[
                pl.BlockSpec((PACK_ROWS, 8, TL),
                             lambda c, j: (0, 0, c * tiles_per_core + j)),
            ],
            out_specs=pl.BlockSpec((1, nposes, 8, TL),
                                   lambda c, j: (c, 0, 0, 0)),
        ),
        compiler_params=pltpu.CompilerParams(
            dimension_semantics=("parallel", "arbitrary"),
            vmem_limit_bytes=64 * 1024 * 1024),
    )(packed)                                               # (NCORES, nposes, 8, TL)

    # sum the per-core, per-lane partials -> (1, nposes)
    return jnp.sum(out, axis=(0, 2, 3))[None, :]

    # TODO(synk): output_block_pair_energies=True path (scatter of scores/2 into
    # the (nposes, nblocks, nblocks) block-pair matrix) is not implemented.


def ref_forward(coords, block_coord_offset, constraint_atoms,
                constraint_function_inds, constraint_params):
    """Pure-JAX mirror of the torch forward (same synthetic constraint fns)."""
    nposes, nblocks = block_coord_offset.shape
    pose_inds = constraint_atoms[:, :, 0]
    res_inds = constraint_atoms[:, :, 1]
    atom_inds = constraint_atoms[:, :, 2]
    gidx = block_coord_offset[pose_inds, res_inds] + atom_inds
    ac = coords[pose_inds, gidx].astype(jnp.float32)        # (N, 4, 3)

    d01 = jnp.sqrt(jnp.sum((ac[:, 0] - ac[:, 1]) ** 2, axis=-1))
    d03 = jnp.sqrt(jnp.sum((ac[:, 0] - ac[:, 3]) ** 2, axis=-1))
    p0 = constraint_params[:, 0]
    p1 = constraint_params[:, 1]
    s0 = ((d01 - p0) / p1) ** 2
    s1 = jnp.maximum(d03 - p0, 0.0) ** 2 * p1
    scores = (jnp.where(constraint_function_inds == 0, s0, 0.0)
              + jnp.where(constraint_function_inds == 1, s1, 0.0))

    # distribute_scores + sum over (1, 2)
    idx1 = pose_inds[:, 0] * nblocks ** 2 + res_inds[:, 0] * nblocks + res_inds[:, 3]
    idx2 = pose_inds[:, 0] * nblocks ** 2 + res_inds[:, 3] * nblocks + res_inds[:, 0]
    flat = jnp.zeros((nposes * nblocks * nblocks,), jnp.float32)
    flat = flat.at[idx1].add(scores / 2).at[idx2].add(scores / 2)
    block_scores = flat.reshape(nposes, nblocks, nblocks)
    return jnp.sum(block_scores, axis=(1, 2))[None, :]


if __name__ == "__main__":
    key = jax.random.PRNGKey(0)
    nposes, nblocks, atoms_per_block = 2, 8, 16
    max_atoms = nblocks * atoms_per_block          # 128 atoms per pose
    n_cnstr = 300                                  # exercises the padding path

    k1, k2, k3, k4, k5, k6, k7 = jax.random.split(key, 7)

    coords = 5.0 * jax.random.normal(k1, (nposes, max_atoms, 3), jnp.float32)
    block_coord_offset = jnp.tile(
        (jnp.arange(nblocks, dtype=jnp.int32) * atoms_per_block)[None, :],
        (nposes, 1))                                         # (nposes, nblocks)

    pose_c = jax.random.randint(k2, (n_cnstr, 1), 0, nposes)
    res_c = jax.random.randint(k3, (n_cnstr, 4), 0, nblocks)
    atom_c = jax.random.randint(k4, (n_cnstr, 4), 0, atoms_per_block)
    constraint_atoms = jnp.stack(
        [jnp.broadcast_to(pose_c, (n_cnstr, 4)), res_c, atom_c], axis=-1
    ).astype(jnp.int32)                                      # (N, 4, 3)

    constraint_function_inds = jax.random.randint(
        k5, (n_cnstr,), 0, 2).astype(jnp.int32)
    constraint_params = jnp.stack(
        [jax.random.uniform(k6, (n_cnstr,), minval=2.0, maxval=5.0),
         jax.random.uniform(k7, (n_cnstr,), minval=0.5, maxval=1.5)],
        axis=1).astype(jnp.float32)                          # (N, 2)

    out = constraint_whole_pose_score(
        coords, block_coord_offset, constraint_atoms,
        constraint_function_inds, constraint_params)
    out = jax.block_until_ready(out)

    ref = ref_forward(coords, block_coord_offset, constraint_atoms,
                      constraint_function_inds, constraint_params)

    assert out.shape == (1, nposes)
    assert jnp.allclose(out, ref, rtol=1e-4, atol=1e-3), (out, ref)
    print("KERNEL_OK")
</pallas_src>

<mosaic_0001>
module attributes {stable_mosaic.version = 11 : i64} {
  func.func @cnstr_kernel(%arg0: i32, %arg1: i32, %arg2: memref<16x8x1024xf32, #tpu.memory_space<vmem>>, %arg3: memref<1x2x8x1024xf32, #tpu.memory_space<vmem>>) attributes {dimension_semantics = [#tpu.dimension_semantics<parallel>, #tpu.dimension_semantics<arbitrary>], iteration_bounds = array<i64: 2, 1>, scalar_prefetch = 0 : i64, scratch_operands = 0 : i64, tpu.core_type = #tpu.core_type<tc>, window_params = [{transform_indices = @transform_0, window_bounds = array<i64: 16, 8, 1024>}, {transform_indices = @transform_1, window_bounds = array<i64: 1, 2, 8, 1024>}]} {
    %c0_i32 = arith.constant 0 : i32
    %0 = arith.cmpi eq, %arg1, %c0_i32 : i32
    %1 = arith.extui %0 : i1 to i32
    %c0_i32_0 = arith.constant 0 : i32
    %2 = arith.cmpi ne, %1, %c0_i32_0 : i32
    scf.if %2 {
      %cst_61 = arith.constant 0.000000e+00 : f32
      %96 = vector.broadcast %cst_61 : f32 to vector<1x2x8x1024xf32>
      %c0_62 = arith.constant 0 : index
      %c0_63 = arith.constant 0 : index
      %c0_64 = arith.constant 0 : index
      %c0_65 = arith.constant 0 : index
      %97 = vector.load %arg3[%c0_62, %c0_63, %c0_64, %c0_65] : memref<1x2x8x1024xf32, #tpu.memory_space<vmem>>, vector<1x2x8x1024xf32>
      tpu.vector_store %arg3[%c0_62, %c0_63, %c0_64, %c0_65], %96 {strides = array<i32>} : memref<1x2x8x1024xf32, #tpu.memory_space<vmem>>, vector<1x2x8x1024xf32>,
    } else {
    }
    %c0 = arith.constant 0 : index
    %c0_1 = arith.constant 0 : index
    %c0_2 = arith.constant 0 : index
    %3 = vector.load %arg2[%c0, %c0_1, %c0_2] : memref<16x8x1024xf32, #tpu.memory_space<vmem>>, vector<1x8x1024xf32>
    %4 = vector.shape_cast %3 : vector<1x8x1024xf32> to vector<8x1024xf32>
    %c3 = arith.constant 3 : index
    %c0_3 = arith.constant 0 : index
    %c0_4 = arith.constant 0 : index
    %5 = vector.load %arg2[%c3, %c0_3, %c0_4] : memref<16x8x1024xf32, #tpu.memory_space<vmem>>, vector<1x8x1024xf32>
    %6 = vector.shape_cast %5 : vector<1x8x1024xf32> to vector<8x1024xf32>
    %7 = arith.subf %4, %6 : vector<8x1024xf32>
    %c1 = arith.constant 1 : index
    %c0_5 = arith.constant 0 : index
    %c0_6 = arith.constant 0 : index
    %8 = vector.load %arg2[%c1, %c0_5, %c0_6] : memref<16x8x1024xf32, #tpu.memory_space<vmem>>, vector<1x8x1024xf32>
    %9 = vector.shape_cast %8 : vector<1x8x1024xf32> to vector<8x1024xf32>
    %c4 = arith.constant 4 : index
    %c0_7 = arith.constant 0 : index
    %c0_8 = arith.constant 0 : index
    %10 = vector.load %arg2[%c4, %c0_7, %c0_8] : memref<16x8x1024xf32, #tpu.memory_space<vmem>>, vector<1x8x1024xf32>
    %11 = vector.shape_cast %10 : vector<1x8x1024xf32> to vector<8x1024xf32>
    %12 = arith.subf %9, %11 : vector<8x1024xf32>
    %c2 = arith.constant 2 : index
    %c0_9 = arith.constant 0 : index
    %c0_10 = arith.constant 0 : index
    %13 = vector.load %arg2[%c2, %c0_9, %c0_10] : memref<16x8x1024xf32, #tpu.memory_space<vmem>>, vector<1x8x1024xf32>
    %14 = vector.shape_cast %13 : vector<1x8x1024xf32> to vector<8x1024xf32>
    %c5 = arith.constant 5 : index
    %c0_11 = arith.constant 0 : index
    %c0_12 = arith.constant 0 : index
    %15 = vector.load %arg2[%c5, %c0_11, %c0_12] : memref<16x8x1024xf32, #tpu.memory_space<vmem>>, vector<1x8x1024xf32>
    %16 = vector.shape_cast %15 : vector<1x8x1024xf32> to vector<8x1024xf32>
    %17 = arith.subf %14, %16 : vector<8x1024xf32>
    %18 = arith.mulf %7, %7 : vector<8x1024xf32>
    %19 = arith.mulf %12, %12 : vector<8x1024xf32>
    %20 = arith.addf %18, %19 : vector<8x1024xf32>
    %21 = arith.mulf %17, %17 : vector<8x1024xf32>
    %22 = arith.addf %20, %21 : vector<8x1024xf32>
    %23 = math.sqrt %22 : vector<8x1024xf32>
    %c0_13 = arith.constant 0 : index
    %c0_14 = arith.constant 0 : index
    %c0_15 = arith.constant 0 : index
    %24 = vector.load %arg2[%c0_13, %c0_14, %c0_15] : memref<16x8x1024xf32, #tpu.memory_space<vmem>>, vector<1x8x1024xf32>
    %25 = vector.shape_cast %24 : vector<1x8x1024xf32> to vector<8x1024xf32>
    %c9 = arith.constant 9 : index
    %c0_16 = arith.constant 0 : index
    %c0_17 = arith.constant 0 : index
    %26 = vector.load %arg2[%c9, %c0_16, %c0_17] : memref<16x8x1024xf32, #tpu.memory_space<vmem>>, vector<1x8x1024xf32>
    %27 = vector.shape_cast %26 : vector<1x8x1024xf32> to vector<8x1024xf32>
    %28 = arith.subf %25, %27 : vector<8x1024xf32>
    %c1_18 = arith.constant 1 : index
    %c0_19 = arith.constant 0 : index
    %c0_20 = arith.constant 0 : index
    %29 = vector.load %arg2[%c1_18, %c0_19, %c0_20] : memref<16x8x1024xf32, #tpu.memory_space<vmem>>, vector<1x8x1024xf32>
    %30 = vector.shape_cast %29 : vector<1x8x1024xf32> to vector<8x1024xf32>
    %c10 = arith.constant 10 : index
    %c0_21 = arith.constant 0 : index
    %c0_22 = arith.constant 0 : index
    %31 = vector.load %arg2[%c10, %c0_21, %c0_22] : memref<16x8x1024xf32, #tpu.memory_space<vmem>>, vector<1x8x1024xf32>
    %32 = vector.shape_cast %31 : vector<1x8x1024xf32> to vector<8x1024xf32>
    %33 = arith.subf %30, %32 : vector<8x1024xf32>
    %c2_23 = arith.constant 2 : index
    %c0_24 = arith.constant 0 : index
    %c0_25 = arith.constant 0 : index
    %34 = vector.load %arg2[%c2_23, %c0_24, %c0_25] : memref<16x8x1024xf32, #tpu.memory_space<vmem>>, vector<1x8x1024xf32>
    %35 = vector.shape_cast %34 : vector<1x8x1024xf32> to vector<8x1024xf32>
    %c11 = arith.constant 11 : index
    %c0_26 = arith.constant 0 : index
    %c0_27 = arith.constant 0 : index
    %36 = vector.load %arg2[%c11, %c0_26, %c0_27] : memref<16x8x1024xf32, #tpu.memory_space<vmem>>, vector<1x8x1024xf32>
    %37 = vector.shape_cast %36 : vector<1x8x1024xf32> to vector<8x1024xf32>
    %38 = arith.subf %35, %37 : vector<8x1024xf32>
    %39 = arith.mulf %28, %28 : vector<8x1024xf32>
    %40 = arith.mulf %33, %33 : vector<8x1024xf32>
    %41 = arith.addf %39, %40 : vector<8x1024xf32>
    %42 = arith.mulf %38, %38 : vector<8x1024xf32>
    %43 = arith.addf %41, %42 : vector<8x1024xf32>
    %44 = math.sqrt %43 : vector<8x1024xf32>
    %c12 = arith.constant 12 : index
    %c0_28 = arith.constant 0 : index
    %c0_29 = arith.constant 0 : index
    %45 = vector.load %arg2[%c12, %c0_28, %c0_29] : memref<16x8x1024xf32, #tpu.memory_space<vmem>>, vector<1x8x1024xf32>
    %46 = vector.shape_cast %45 : vector<1x8x1024xf32> to vector<8x1024xf32>
    %c13 = arith.constant 13 : index
    %c0_30 = arith.constant 0 : index
    %c0_31 = arith.constant 0 : index
    %47 = vector.load %arg2[%c13, %c0_30, %c0_31] : memref<16x8x1024xf32, #tpu.memory_space<vmem>>, vector<1x8x1024xf32>
    %48 = vector.shape_cast %47 : vector<1x8x1024xf32> to vector<8x1024xf32>
    %c14 = arith.constant 14 : index
    %c0_32 = arith.constant 0 : index
    %c0_33 = arith.constant 0 : index
    %49 = vector.load %arg2[%c14, %c0_32, %c0_33] : memref<16x8x1024xf32, #tpu.memory_space<vmem>>, vector<1x8x1024xf32>
    %50 = vector.shape_cast %49 : vector<1x8x1024xf32> to vector<8x1024xf32>
    %51 = tpu.bitcast %50 : vector<8x1024xf32> -> vector<8x1024xi32>
    %c15 = arith.constant 15 : index
    %c0_34 = arith.constant 0 : index
    %c0_35 = arith.constant 0 : index
    %52 = vector.load %arg2[%c15, %c0_34, %c0_35] : memref<16x8x1024xf32, #tpu.memory_space<vmem>>, vector<1x8x1024xf32>
    %53 = vector.shape_cast %52 : vector<1x8x1024xf32> to vector<8x1024xf32>
    %54 = tpu.bitcast %53 : vector<8x1024xf32> -> vector<8x1024xi32>
    %cst = arith.constant 0.000000e+00 : f32
    %55 = vector.broadcast %cst : f32 to vector<8x1024xf32>
    %56 = arith.cmpf one, %48, %55 : vector<8x1024xf32>
    %cst_36 = arith.constant 1.000000e+00 : f32
    %57 = vector.broadcast %cst_36 : f32 to vector<8x1024xf32>
    %58 = arith.select %56, %48, %57 : vector<8x1024xi1>, vector<8x1024xf32>
    %59 = arith.subf %23, %46 : vector<8x1024xf32>
    %60 = arith.divf %59, %58 : vector<8x1024xf32>
    %61 = arith.mulf %60, %60 : vector<8x1024xf32>
    %62 = arith.subf %44, %46 : vector<8x1024xf32>
    %cst_37 = arith.constant 0.000000e+00 : f32
    %63 = vector.broadcast %cst_37 : f32 to vector<8x1024xf32>
    %64 = arith.maximumf %62, %63 : vector<8x1024xf32>
    %65 = arith.mulf %64, %64 : vector<8x1024xf32>
    %66 = arith.mulf %65, %48 : vector<8x1024xf32>
    %c0_i32_38 = arith.constant 0 : i32
    %67 = vector.broadcast %c0_i32_38 : i32 to vector<8x1024xi32>
    %68 = arith.cmpi eq, %51, %67 : vector<8x1024xi32>
    %cst_39 = arith.constant 0.000000e+00 : f32
    %69 = vector.broadcast %cst_39 : f32 to vector<8x1024xf32>
    %70 = arith.select %68, %61, %69 : vector<8x1024xi1>, vector<8x1024xf32>
    %c1_i32 = arith.constant 1 : i32
    %71 = vector.broadcast %c1_i32 : i32 to vector<8x1024xi32>
    %72 = arith.cmpi eq, %51, %71 : vector<8x1024xi32>
    %cst_40 = arith.constant 0.000000e+00 : f32
    %73 = vector.broadcast %cst_40 : f32 to vector<8x1024xf32>
    %74 = arith.select %72, %66, %73 : vector<8x1024xi1>, vector<8x1024xf32>
    %75 = arith.addf %70, %74 : vector<8x1024xf32>
    %c0_41 = arith.constant 0 : index
    %c0_42 = arith.constant 0 : index
    %c0_43 = arith.constant 0 : index
    %c0_44 = arith.constant 0 : index
    %76 = vector.load %arg3[%c0_41, %c0_42, %c0_43, %c0_44] : memref<1x2x8x1024xf32, #tpu.memory_space<vmem>>, vector<1x1x8x1024xf32>
    %77 = vector.shape_cast %76 : vector<1x1x8x1024xf32> to vector<8x1024xf32>
    %c0_i32_45 = arith.constant 0 : i32
    %78 = vector.broadcast %c0_i32_45 : i32 to vector<8x1024xi32>
    %79 = arith.cmpi eq, %54, %78 : vector<8x1024xi32>
    %cst_46 = arith.constant 0.000000e+00 : f32
    %80 = vector.broadcast %cst_46 : f32 to vector<8x1024xf32>
    %81 = arith.select %79, %75, %80 : vector<8x1024xi1>, vector<8x1024xf32>
    %82 = arith.addf %77, %81 : vector<8x1024xf32>
    %c0_47 = arith.constant 0 : index
    %c0_48 = arith.constant 0 : index
    %c0_49 = arith.constant 0 : index
    %c0_50 = arith.constant 0 : index
    %83 = vector.load %arg3[%c0_47, %c0_48, %c0_49, %c0_50] : memref<1x2x8x1024xf32, #tpu.memory_space<vmem>>, vector<1x1x8x1024xf32>
    %84 = vector.shape_cast %83 : vector<1x1x8x1024xf32> to vector<8x1024xf32>
    %85 = vector.shape_cast %82 : vector<8x1024xf32> to vector<1x1x8x1024xf32>
    tpu.vector_store %arg3[%c0_47, %c0_48, %c0_49, %c0_50], %85 {strides = array<i32>} : memref<1x2x8x1024xf32, #tpu.memory_space<vmem>>, vector<1x1x8x1024xf32>,
    %c0_51 = arith.constant 0 : index
    %c1_52 = arith.constant 1 : index
    %c0_53 = arith.constant 0 : index
    %c0_54 = arith.constant 0 : index
    %86 = vector.load %arg3[%c0_51, %c1_52, %c0_53, %c0_54] : memref<1x2x8x1024xf32, #tpu.memory_space<vmem>>, vector<1x1x8x1024xf32>
    %87 = vector.shape_cast %86 : vector<1x1x8x1024xf32> to vector<8x1024xf32>
    %c1_i32_55 = arith.constant 1 : i32
    %88 = vector.broadcast %c1_i32_55 : i32 to vector<8x1024xi32>
    %89 = arith.cmpi eq, %54, %88 : vector<8x1024xi32>
    %cst_56 = arith.constant 0.000000e+00 : f32
    %90 = vector.broadcast %cst_56 : f32 to vector<8x1024xf32>
    %91 = arith.select %89, %75, %90 : vector<8x1024xi1>, vector<8x1024xf32>
    %92 = arith.addf %87, %91 : vector<8x1024xf32>
    %c0_57 = arith.constant 0 : index
    %c1_58 = arith.constant 1 : index
    %c0_59 = arith.constant 0 : index
    %c0_60 = arith.constant 0 : index
    %93 = vector.load %arg3[%c0_57, %c1_58, %c0_59, %c0_60] : memref<1x2x8x1024xf32, #tpu.memory_space<vmem>>, vector<1x1x8x1024xf32>
    %94 = vector.shape_cast %93 : vector<1x1x8x1024xf32> to vector<8x1024xf32>
    %95 = vector.shape_cast %92 : vector<8x1024xf32> to vector<1x1x8x1024xf32>
    tpu.vector_store %arg3[%c0_57, %c1_58, %c0_59, %c0_60], %95 {strides = array<i32>} : memref<1x2x8x1024xf32, #tpu.memory_space<vmem>>, vector<1x1x8x1024xf32>,
    return
  }
  func.func @transform_0(%arg0: i32, %arg1: i32) -> (i32, i32, i32) {
    %c1_i32 = arith.constant 1 : i32
    %0 = arith.muli %arg0, %c1_i32 : i32
    %1 = arith.addi %0, %arg1 : i32
    %c0_i32 = arith.constant 0 : i32
    %c0_i32_0 = arith.constant 0 : i32
    %c0_i32_1 = arith.constant 0 : i32
    return %c0_i32, %c0_i32_0, %1 : i32, i32, i32
  }
  func.func @transform_1(%arg0: i32, %arg1: i32) -> (i32, i32, i32, i32) {
    %c0_i32 = arith.constant 0 : i32
    %c0_i32_0 = arith.constant 0 : i32
    %c0_i32_1 = arith.constant 0 : i32
    %c0_i32_2 = arith.constant 0 : i32
    return %arg0, %c0_i32, %c0_i32_0, %c0_i32_1 : i32, i32, i32, i32
  }
}

</mosaic_0001>

<llo_original>
// kernel: tpu_custom_call.1
$region0: #{tpu_custom_call.1}
  #allocation0 [shape = 'u32[]', space=smem, size = 0x4, offset = 0x4, fixed_abs, tag = 'smem constant byte address 0x4 - core index']
  #allocation1 [shape = 'u32[144,128]{1,0:T(1,128)}', space=vmem, size = 0x12000, scoped, tag = 'internal scratch']
  %s0 = inlined_call_operand.hbm [shape: f32[16,8,2048], index: 0, kind: input, shape index: {}]
  %s1 = inlined_call_operand.hbm [shape: f32[2,2,8,1024], index: 1, kind: output, shape index: {}]
  %s2 = sld [smem:[#allocation0]]
  $region45: #{tpu_custom_call.1} parent=0
    _
  %s4 = ssub.s32 1, %s2
  %s5 = scalar_select 0, %s4, %s2
  $region1: #{tpu_custom_call.1} parent=0
    #allocation2 [shape = 'u8[1048576]{0}', space=vmem, size = 0x100000, scoped, tag = 'input window, operand 0']
    #allocation3 [shape = 's32[2]{0}', space=sflag, size = 0x8, scoped, tag = 'scoped memory for tpu_custom_call.1']
    #allocation4 [shape = 's32[2]{0}', space=sflag, size = 0x8, scoped, tag = 'scoped memory for tpu_custom_call.1']
    #allocation5 [shape = 'u8[131072]{0}', space=vmem, size = 0x20000, scoped, tag = 'output window, operand 0']
    %6 = vsyncpa [#allocation3], 0
    %s7 = scalar_lea.sflag [#allocation3], 1
    %8 = vsyncpa %s7, 0
    %9 = vsyncpa [#allocation4], 0
    %s10 = scalar_lea.sflag [#allocation4], 1
    %11 = vsyncpa %s10, 0
    loop: start=0, step=1, limit=4
    $region2: #{tpu_custom_call.1} parent=1 // loop_pre_header
      _
    $region3: #{tpu_custom_call.1} parent=1 // loop_header
      %s13 = sphi 0, %s17
      %p14 = scmp.ge.s32.totalorder %s13, 4
      %s20 = sphi 0, %s32
      %s21 = sphi 0, %s28
      %s22 = sphi 0, %s20
      %s23 = sphi 0, %s21
      %s24 = sphi 0, %s22
      %s25 = sphi 0, %s23
      %s37 = sphi 0, %s39
      %s40 = sphi 0, %s37
      %s41 = sphi 0, %s40
      %s57 = sphi 0, %s41
      %s63 = sphi 0, %s65
      %s66 = sphi 0, %s63
      %s67 = sphi 0, %s66
      %s83 = sphi 0, %s67
    $region4: #{tpu_custom_call.1} parent=1 // loop_header_branch
      %16 = sbr.rel (%p14) target = $region8
    $region5: #{tpu_custom_call.1} parent=1 // loop_body
      %s18 = ssub.s32 %s13, 1
      %s19 = ssub.s32 %s13, 2
      %s26 = sadd.s32 1, %s21
      %p27 = scmp.ge.s32.totalorder %s26, 1
      %s28 = scalar_select %p27, 0, %s26
      %s29 = sadd.s32 1, %s20
      %s30 = scalar_select %p27, %s29, %s20
      %p31 = scmp.ge.s32.totalorder %s30, 2
      %s32 = scalar_select %p31, 0, %s30
      %s33 = sadd.s32 %s20, %s21
      %s34 = sadd.s32 %s32, %s28
      %s35 = ssub.s32 %s33, %s34
      %p36 = scmp.eq.s32.totalorder %s35, 0
      %s38 = sadd.s32 %s37, 1
      %s39 = scalar_select %p36, %s37, %s38
      %p42 = pneg %p36
      %p43 = scmp.eq.s32.totalorder %s13, 1
      %p44 = por %p42, %p43
      %p45 = scmp.ne.s32.totalorder %s37, %s40
      %p46 = scmp.eq.s32.totalorder %s13, 0
      %p47 = por %p45, %p46
      %p48 = scmp.ne.s32.totalorder %s37, %s40
      %p49 = scmp.eq.s32.totalorder %s18, 1
      %p50 = por %p48, %p49
      %p51 = scmp.ne.s32.totalorder %s40, %s41
      %p52 = scmp.eq.s32.totalorder %s18, 0
      %p53 = por %p51, %p52
      %p54 = scmp.ne.s32.totalorder %s40, %s41
      %p55 = scmp.eq.s32.totalorder %s19, 1
      %p56 = por %p54, %p55
      %p58 = scmp.ne.s32.totalorder %s41, %s57
      %p59 = scmp.eq.s32.totalorder %s19, 0
      %p60 = por %p58, %p59
      %s61 = ssub.s32 %s20, %s32
      %p62 = scmp.eq.s32.totalorder %s61, 0
      %s64 = sadd.s32 %s63, 1
      %s65 = scalar_select %p62, %s63, %s64
      %p68 = pneg %p62
      %p69 = scmp.eq.s32.totalorder %s13, 1
      %p70 = por %p68, %p69
      %p71 = scmp.ne.s32.totalorder %s63, %s66
      %p72 = scmp.eq.s32.totalorder %s13, 0
      %p73 = por %p71, %p72
      %p74 = scmp.ne.s32.totalorder %s63, %s66
      %p75 = scmp.eq.s32.totalorder %s18, 1
      %p76 = por %p74, %p75
      %p77 = scmp.ne.s32.totalorder %s66, %s67
      %p78 = scmp.eq.s32.totalorder %s18, 0
      %p79 = por %p77, %p78
      %p80 = scmp.ne.s32.totalorder %s66, %s67
      %p81 = scmp.eq.s32.totalorder %s19, 1
      %p82 = por %p80, %p81
      %p84 = scmp.ne.s32.totalorder %s67, %s83
      %p85 = scmp.eq.s32.totalorder %s19, 0
      %p86 = por %p84, %p85
      %p87 = scmp.le.s32.totalorder 1, %s13
      %p88 = scmp.lt.s32.totalorder %s13, 3
      %p89 = pnand %p87, %p88
      %p90 = pneg %p89
      // Predicated region
      $region9: #{tpu_custom_call.1} parent=5 // pred_check
        _
      $region10: #{tpu_custom_call.1} parent=5 // pred_check_branch
        %92 = sbr.rel (%p89) target = $region12
      $region11: #{tpu_custom_call.1} parent=5 // pred_region
        %s93 = ssub.s32 %s13, 1
      $region12: #{tpu_custom_call.1} parent=5 // pred_fallthru
        _
      %p94 = scmp.lt.s32.totalorder %s13, 2
      // Predicated region
      $region13: #{tpu_custom_call.1} parent=5 // pred_check
        %p95 = pneg %p94
      $region14: #{tpu_custom_call.1} parent=5 // pred_check_branch
        %97 = sbr.rel (%p95) target = $region16
      $region15: #{tpu_custom_call.1} parent=5 // pred_region
        // Predicated region
        $region17: #{tpu_custom_call.1} parent=15 // pred_check
          %p98 = pneg %p47
        $region18: #{tpu_custom_call.1} parent=15 // pred_check_branch
          %100 = sbr.rel (%p98) target = $region20
        $region19: #{tpu_custom_call.1} parent=15 // pred_region
          %s101 = sand.u32 %s37, 1
          %s102 = scalar_lea.sflag [#allocation3], %s101
          %s103 = sand.u32 %s37, 1
          %s104 = smul.addr %s103, 1024
          %s105 = scalar_lea.vmem [#allocation2], %s104
          %s106 = sadd.s32 %s20, %s21
          %s107 = smul.u32 8, %s106
          %s109 = ssub.s32 16384, 16384
          %110 = vsyncadd %s102, %s109
          %s111 = smul.addr %s107, 128
          %s112 = scalar_lea.hbm %s0, %s111
          %s113 = sshll.u32 %s105, 4
          %s114 = int_to_ptr.vmem [resolvable:$true] %s113
          %119 = dma.hbm_to_vmem [thread:$0]  %s112, 16384, %s114, %s102, 2048, 1024, 64
        $region20: #{tpu_custom_call.1} parent=15 // pred_fallthru
          _
      $region16: #{tpu_custom_call.1} parent=5 // pred_fallthru
        _
      %p120 = scmp.le.s32.totalorder 1, %s13
      %p121 = scmp.lt.s32.totalorder %s13, 3
      %p122 = pnand %p120, %p121
      %p123 = pneg %p122
      // Predicated region
      $region21: #{tpu_custom_call.1} parent=5 // pred_check
        _
      $region22: #{tpu_custom_call.1} parent=5 // pred_check_branch
        %125 = sbr.rel (%p122) target = $region24
      $region23: #{tpu_custom_call.1} parent=5 // pred_region
        %s126 = ssub.s32 %s13, 1
        %s127 = sand.u32 %s40, 1
        %s128 = scalar_lea.sflag [#allocation3], %s127
        %s129 = sand.u32 %s40, 1
        %s130 = smul.addr %s129, 1024
        %s131 = scalar_lea.vmem [#allocation2], %s130
        // Predicated region
        $region25: #{tpu_custom_call.1} parent=23 // pred_check
          %p132 = pneg %p53
        $region26: #{tpu_custom_call.1} parent=23 // pred_check_branch
          %134 = sbr.rel (%p132) target = $region28
        $region27: #{tpu_custom_call.1} parent=23 // pred_region
          %135 = dma.done %s128, 16384
        $region28: #{tpu_custom_call.1} parent=23 // pred_fallthru
          _
        %s136 = sand.u32 %s40, 1
        %s137 = scalar_lea.sflag [#allocation3], %s136
        %s138 = sand.u32 %s40, 1
        %s139 = smul.addr %s138, 1024
        %s140 = scalar_lea.vmem [#allocation2], %s139
        %p141 = pneg %p53
        %p142 = pneg %p50
        %p143 = pneg %p79
        %p144 = pneg %p76
        %s145 = sand.u32 %s66, 1
        %s146 = scalar_lea.sflag [#allocation4], %s145
        %s147 = sand.u32 %s66, 1
        %s148 = smul.addr %s147, 128
        %s149 = scalar_lea.vmem [#allocation5], %s148
        %s150 = sadd.s32 %s22, %s23
        %s151 = smul.u32 8, %s150
        %p152 = scmp.eq.s32.totalorder %s23, 0
        // Predicated region
        $region29: #{tpu_custom_call.1} parent=23 // pred_check
          %p153 = pneg %p152
        $region30: #{tpu_custom_call.1} parent=23 // pred_check_branch
          %155 = sbr.rel (%p153) target = $region32
        $region31: #{tpu_custom_call.1} parent=23 // pred_region
          %156 = vst [vmem:[%s149] sm:$0xff] 0.0
          %157 = vst [vmem:[%s149 + $0x8] sm:$0xff] 0.0
          %158 = vst [vmem:[%s149 + $0x10] sm:$0xff] 0.0
          %159 = vst [vmem:[%s149 + $0x18] sm:$0xff] 0.0
          %160 = vst [vmem:[%s149 + $0x20] sm:$0xff] 0.0
          %161 = vst [vmem:[%s149 + $0x28] sm:$0xff] 0.0
          %162 = vst [vmem:[%s149 + $0x30] sm:$0xff] 0.0
          %163 = vst [vmem:[%s149 + $0x38] sm:$0xff] 0.0
          %164 = vst [vmem:[%s149 + $0x40] sm:$0xff] 0.0
          %165 = vst [vmem:[%s149 + $0x48] sm:$0xff] 0.0
          %166 = vst [vmem:[%s149 + $0x50] sm:$0xff] 0.0
          %167 = vst [vmem:[%s149 + $0x58] sm:$0xff] 0.0
          %168 = vst [vmem:[%s149 + $0x60] sm:$0xff] 0.0
          %169 = vst [vmem:[%s149 + $0x68] sm:$0xff] 0.0
          %170 = vst [vmem:[%s149 + $0x70] sm:$0xff] 0.0
          %171 = vst [vmem:[%s149 + $0x78] sm:$0xff] 0.0
        $region32: #{tpu_custom_call.1} parent=23 // pred_fallthru
          _
        %v172 = vld [vmem:[%s131] sm:$0xff]
        %v173 = vld [vmem:[%s131 + $0x8] sm:$0xff]
        %v174 = vld [vmem:[%s131 + $0x10] sm:$0xff]
        %v175 = vld [vmem:[%s131 + $0x18] sm:$0xff]
        %v176 = vld [vmem:[%s131 + $0x20] sm:$0xff]
        %v177 = vld [vmem:[%s131 + $0x28] sm:$0xff]
        %v178 = vld [vmem:[%s131 + $0x30] sm:$0xff]
        %v179 = vld [vmem:[%s131 + $0x38] sm:$0xff]
        %s180 = scalar_lea.vmem %s131, 192 [#allocation2]
        %v181 = vld [vmem:[%s180] sm:$0xff]
        %v182 = vld [vmem:[%s180 + $0x8] sm:$0xff]
        %v183 = vld [vmem:[%s180 + $0x10] sm:$0xff]
        %v184 = vld [vmem:[%s180 + $0x18] sm:$0xff]
        %v185 = vld [vmem:[%s180 + $0x20] sm:$0xff]
        %v186 = vld [vmem:[%s180 + $0x28] sm:$0xff]
        %v187 = vld [vmem:[%s180 + $0x30] sm:$0xff]
        %v188 = vld [vmem:[%s180 + $0x38] sm:$0xff]
        %v189 = vsub.f32 %v172, %v181
        %v190 = vsub.f32 %v173, %v182
        %v191 = vsub.f32 %v174, %v183
        %v192 = vsub.f32 %v175, %v184
        %v193 = vsub.f32 %v176, %v185
        %v194 = vsub.f32 %v177, %v186
        %v195 = vsub.f32 %v178, %v187
        %v196 = vsub.f32 %v179, %v188
        %s197 = scalar_lea.vmem %s131, 64 [#allocation2]
        %v198 = vld [vmem:[%s197] sm:$0xff]
        %v199 = vld [vmem:[%s197 + $0x8] sm:$0xff]
        %v200 = vld [vmem:[%s197 + $0x10] sm:$0xff]
        %v201 = vld [vmem:[%s197 + $0x18] sm:$0xff]
        %v202 = vld [vmem:[%s197 + $0x20] sm:$0xff]
        %v203 = vld [vmem:[%s197 + $0x28] sm:$0xff]
        %v204 = vld [vmem:[%s197 + $0x30] sm:$0xff]
        %v205 = vld [vmem:[%s197 + $0x38] sm:$0xff]
        %s206 = scalar_lea.vmem %s131, 256 [#allocation2]
        %v207 = vld [vmem:[%s206] sm:$0xff]
        %v208 = vld [vmem:[%s206 + $0x8] sm:$0xff]
        %v209 = vld [vmem:[%s206 + $0x10] sm:$0xff]
        %v210 = vld [vmem:[%s206 + $0x18] sm:$0xff]
        %v211 = vld [vmem:[%s206 + $0x20] sm:$0xff]
        %v212 = vld [vmem:[%s206 + $0x28] sm:$0xff]
        %v213 = vld [vmem:[%s206 + $0x30] sm:$0xff]
        %v214 = vld [vmem:[%s206 + $0x38] sm:$0xff]
        %v215 = vsub.f32 %v198, %v207
        %v216 = vsub.f32 %v199, %v208
        %v217 = vsub.f32 %v200, %v209
        %v218 = vsub.f32 %v201, %v210
        %v219 = vsub.f32 %v202, %v211
        %v220 = vsub.f32 %v203, %v212
        %v221 = vsub.f32 %v204, %v213
        %v222 = vsub.f32 %v205, %v214
        %s223 = scalar_lea.vmem %s131, 128 [#allocation2]
        %v224 = vld [vmem:[%s223] sm:$0xff]
        %v225 = vld [vmem:[%s223 + $0x8] sm:$0xff]
        %v226 = vld [vmem:[%s223 + $0x10] sm:$0xff]
        %v227 = vld [vmem:[%s223 + $0x18] sm:$0xff]
        %v228 = vld [vmem:[%s223 + $0x20] sm:$0xff]
        %v229 = vld [vmem:[%s223 + $0x28] sm:$0xff]
        %v230 = vld [vmem:[%s223 + $0x30] sm:$0xff]
        %v231 = vld [vmem:[%s223 + $0x38] sm:$0xff]
        %s232 = scalar_lea.vmem %s131, 320 [#allocation2]
        %v233 = vld [vmem:[%s232] sm:$0xff]
        %v234 = vld [vmem:[%s232 + $0x8] sm:$0xff]
        %v235 = vld [vmem:[%s232 + $0x10] sm:$0xff]
        %v236 = vld [vmem:[%s232 + $0x18] sm:$0xff]
        %v237 = vld [vmem:[%s232 + $0x20] sm:$0xff]
        %v238 = vld [vmem:[%s232 + $0x28] sm:$0xff]
        %v239 = vld [vmem:[%s232 + $0x30] sm:$0xff]
        %v240 = vld [vmem:[%s232 + $0x38] sm:$0xff]
        %v241 = vsub.f32 %v224, %v233
        %v242 = vsub.f32 %v225, %v234
        %v243 = vsub.f32 %v226, %v235
        %v244 = vsub.f32 %v227, %v236
        %v245 = vsub.f32 %v228, %v237
        %v246 = vsub.f32 %v229, %v238
        %v247 = vsub.f32 %v230, %v239
        %v248 = vsub.f32 %v231, %v240
        %v249 = vmul.f32 %v189, %v189
        %v250 = vmul.f32 %v190, %v190
        %v251 = vmul.f32 %v191, %v191
        %v252 = vmul.f32 %v192, %v192
        %v253 = vmul.f32 %v193, %v193
        %v254 = vmul.f32 %v194, %v194
        %v255 = vmul.f32 %v195, %v195
        %v256 = vmul.f32 %v196, %v196
        %v257 = vmul.f32 %v215, %v215
        %v258 = vmul.f32 %v216, %v216
        %v259 = vmul.f32 %v217, %v217
        %v260 = vmul.f32 %v218, %v218
        %v261 = vmul.f32 %v219, %v219
        %v262 = vmul.f32 %v220, %v220
        %v263 = vmul.f32 %v221, %v221
        %v264 = vmul.f32 %v222, %v222
        %v265 = vadd.f32 %v249, %v257
        %v266 = vadd.f32 %v250, %v258
        %v267 = vadd.f32 %v251, %v259
        %v268 = vadd.f32 %v252, %v260
        %v269 = vadd.f32 %v253, %v261
        %v270 = vadd.f32 %v254, %v262
        %v271 = vadd.f32 %v255, %v263
        %v272 = vadd.f32 %v256, %v264
        %v273 = vmul.f32 %v241, %v241
        %v274 = vmul.f32 %v242, %v242
        %v275 = vmul.f32 %v243, %v243
        %v276 = vmul.f32 %v244, %v244
        %v277 = vmul.f32 %v245, %v245
        %v278 = vmul.f32 %v246, %v246
        %v279 = vmul.f32 %v247, %v247
        %v280 = vmul.f32 %v248, %v248
        %v281 = vadd.f32 %v265, %v273
        %v282 = vadd.f32 %v266, %v274
        %v283 = vadd.f32 %v267, %v275
        %v284 = vadd.f32 %v268, %v276
        %v285 = vadd.f32 %v269, %v277
        %v286 = vadd.f32 %v270, %v278
        %v287 = vadd.f32 %v271, %v279
        %v288 = vadd.f32 %v272, %v280
        %v289 = vrsqrt.pop %v281
        %v290 = vmul.f32 %v281, %v289
        %vm291 = vcmp.eq.f32.partialorder %v281, inf
        %v292 = vsel %vm291, %v281, %v290
        %vm293 = vcmp.eq.f32.partialorder %v281, 0.0
        %v294 = vand.u32 %v281, 2147483648
        %v295 = vsel %vm293, %v294, %v292
        %v296 = vrsqrt.pop %v282
        %v297 = vmul.f32 %v282, %v296
        %vm298 = vcmp.eq.f32.partialorder %v282, inf
        %v299 = vsel %vm298, %v282, %v297
        %vm300 = vcmp.eq.f32.partialorder %v282, 0.0
        %v301 = vand.u32 %v282, 2147483648
        %v302 = vsel %vm300, %v301, %v299
        %v303 = vrsqrt.pop %v283
        %v304 = vmul.f32 %v283, %v303
        %vm305 = vcmp.eq.f32.partialorder %v283, inf
        %v306 = vsel %vm305, %v283, %v304
        %vm307 = vcmp.eq.f32.partialorder %v283, 0.0
        %v308 = vand.u32 %v283, 2147483648
        %v309 = vsel %vm307, %v308, %v306
        %v310 = vrsqrt.pop %v284
        %v311 = vmul.f32 %v284, %v310
        %vm312 = vcmp.eq.f32.partialorder %v284, inf
        %v313 = vsel %vm312, %v284, %v311
        %vm314 = vcmp.eq.f32.partialorder %v284, 0.0
        %v315 = vand.u32 %v284, 2147483648
        %v316 = vsel %vm314, %v315, %v313
        %v317 = vrsqrt.pop %v285
        %v318 = vmul.f32 %v285, %v317
        %vm319 = vcmp.eq.f32.partialorder %v285, inf
        %v320 = vsel %vm319, %v285, %v318
        %vm321 = vcmp.eq.f32.partialorder %v285, 0.0
        %v322 = vand.u32 %v285, 2147483648
        %v323 = vsel %vm321, %v322, %v320
        %v324 = vrsqrt.pop %v286
        %v325 = vmul.f32 %v286, %v324
        %vm326 = vcmp.eq.f32.partialorder %v286, inf
        %v327 = vsel %vm326, %v286, %v325
        %vm328 = vcmp.eq.f32.partialorder %v286, 0.0
        %v329 = vand.u32 %v286, 2147483648
        %v330 = vsel %vm328, %v329, %v327
        %v331 = vrsqrt.pop %v287
        %v332 = vmul.f32 %v287, %v331
        %vm333 = vcmp.eq.f32.partialorder %v287, inf
        %v334 = vsel %vm333, %v287, %v332
        %vm335 = vcmp.eq.f32.partialorder %v287, 0.0
        %v336 = vand.u32 %v287, 2147483648
        %v337 = vsel %vm335, %v336, %v334
        %v338 = vrsqrt.pop %v288
        %v339 = vmul.f32 %v288, %v338
        %vm340 = vcmp.eq.f32.partialorder %v288, inf
        %v341 = vsel %vm340, %v288, %v339
        %vm342 = vcmp.eq.f32.partialorder %v288, 0.0
        %v343 = vand.u32 %v288, 2147483648
        %v344 = vsel %vm342, %v343, %v341
        %s345 = scalar_lea.vmem %s131, 576 [#allocation2]
        %v346 = vld [vmem:[%s345] sm:$0xff]
        %v347 = vld [vmem:[%s345 + $0x8] sm:$0xff]
        %v348 = vld [vmem:[%s345 + $0x10] sm:$0xff]
        %v349 = vld [vmem:[%s345 + $0x18] sm:$0xff]
        %v350 = vld [vmem:[%s345 + $0x20] sm:$0xff]
        %v351 = vld [vmem:[%s345 + $0x28] sm:$0xff]
        %v352 = vld [vmem:[%s345 + $0x30] sm:$0xff]
        %v353 = vld [vmem:[%s345 + $0x38] sm:$0xff]
        %v354 = vsub.f32 %v172, %v346
        %v355 = vsub.f32 %v173, %v347
        %v356 = vsub.f32 %v174, %v348
        %v357 = vsub.f32 %v175, %v349
        %v358 = vsub.f32 %v176, %v350
        %v359 = vsub.f32 %v177, %v351
        %v360 = vsub.f32 %v178, %v352
        %v361 = vsub.f32 %v179, %v353
        %s362 = scalar_lea.vmem %s131, 640 [#allocation2]
        %v363 = vld [vmem:[%s362] sm:$0xff]
        %v364 = vld [vmem:[%s362 + $0x8] sm:$0xff]
        %v365 = vld [vmem:[%s362 + $0x10] sm:$0xff]
        %v366 = vld [vmem:[%s362 + $0x18] sm:$0xff]
        %v367 = vld [vmem:[%s362 + $0x20] sm:$0xff]
        %v368 = vld [vmem:[%s362 + $0x28] sm:$0xff]
        %v369 = vld [vmem:[%s362 + $0x30] sm:$0xff]
        %v370 = vld [vmem:[%s362 + $0x38] sm:$0xff]
        %v371 = vsub.f32 %v198, %v363
        %v372 = vsub.f32 %v199, %v364
        %v373 = vsub.f32 %v200, %v365
        %v374 = vsub.f32 %v201, %v366
        %v375 = vsub.f32 %v202, %v367
        %v376 = vsub.f32 %v203, %v368
        %v377 = vsub.f32 %v204, %v369
        %v378 = vsub.f32 %v205, %v370
        %s379 = scalar_lea.vmem %s131, 704 [#allocation2]
        %v380 = vld [vmem:[%s379] sm:$0xff]
        %v381 = vld [vmem:[%s379 + $0x8] sm:$0xff]
        %v382 = vld [vmem:[%s379 + $0x10] sm:$0xff]
        %v383 = vld [vmem:[%s379 + $0x18] sm:$0xff]
        %v384 = vld [vmem:[%s379 + $0x20] sm:$0xff]
        %v385 = vld [vmem:[%s379 + $0x28] sm:$0xff]
        %v386 = vld [vmem:[%s379 + $0x30] sm:$0xff]
        %v387 = vld [vmem:[%s379 + $0x38] sm:$0xff]
        %v388 = vsub.f32 %v224, %v380
        %v389 = vsub.f32 %v225, %v381
        %v390 = vsub.f32 %v226, %v382
        %v391 = vsub.f32 %v227, %v383
        %v392 = vsub.f32 %v228, %v384
        %v393 = vsub.f32 %v229, %v385
        %v394 = vsub.f32 %v230, %v386
        %v395 = vsub.f32 %v231, %v387
        %v396 = vmul.f32 %v354, %v354
        %v397 = vmul.f32 %v355, %v355
        %v398 = vmul.f32 %v356, %v356
        %v399 = vmul.f32 %v357, %v357
        %v400 = vmul.f32 %v358, %v358
        %v401 = vmul.f32 %v359, %v359
        %v402 = vmul.f32 %v360, %v360
        %v403 = vmul.f32 %v361, %v361
        %v404 = vmul.f32 %v371, %v371
        %v405 = vmul.f32 %v372, %v372
        %v406 = vmul.f32 %v373, %v373
        %v407 = vmul.f32 %v374, %v374
        %v408 = vmul.f32 %v375, %v375
        %v409 = vmul.f32 %v376, %v376
        %v410 = vmul.f32 %v377, %v377
        %v411 = vmul.f32 %v378, %v378
        %v412 = vadd.f32 %v396, %v404
        %v413 = vadd.f32 %v397, %v405
        %v414 = vadd.f32 %v398, %v406
        %v415 = vadd.f32 %v399, %v407
        %v416 = vadd.f32 %v400, %v408
        %v417 = vadd.f32 %v401, %v409
        %v418 = vadd.f32 %v402, %v410
        %v419 = vadd.f32 %v403, %v411
        %v420 = vmul.f32 %v388, %v388
        %v421 = vmul.f32 %v389, %v389
        %v422 = vmul.f32 %v390, %v390
        %v423 = vmul.f32 %v391, %v391
        %v424 = vmul.f32 %v392, %v392
        %v425 = vmul.f32 %v393, %v393
        %v426 = vmul.f32 %v394, %v394
        %v427 = vmul.f32 %v395, %v395
        %v428 = vadd.f32 %v412, %v420
        %v429 = vadd.f32 %v413, %v421
        %v430 = vadd.f32 %v414, %v422
        %v431 = vadd.f32 %v415, %v423
        %v432 = vadd.f32 %v416, %v424
        %v433 = vadd.f32 %v417, %v425
        %v434 = vadd.f32 %v418, %v426
        %v435 = vadd.f32 %v419, %v427
        %v436 = vrsqrt.pop %v428
        %v437 = vmul.f32 %v428, %v436
        %vm438 = vcmp.eq.f32.partialorder %v428, inf
        %v439 = vsel %vm438, %v428, %v437
        %vm440 = vcmp.eq.f32.partialorder %v428, 0.0
        %v441 = vand.u32 %v428, 2147483648
        %v442 = vsel %vm440, %v441, %v439
        %v443 = vrsqrt.pop %v429
        %v444 = vmul.f32 %v429, %v443
        %vm445 = vcmp.eq.f32.partialorder %v429, inf
        %v446 = vsel %vm445, %v429, %v444
        %vm447 = vcmp.eq.f32.partialorder %v429, 0.0
        %v448 = vand.u32 %v429, 2147483648
        %v449 = vsel %vm447, %v448, %v446
        %v450 = vrsqrt.pop %v430
        %v451 = vmul.f32 %v430, %v450
        %vm452 = vcmp.eq.f32.partialorder %v430, inf
        %v453 = vsel %vm452, %v430, %v451
        %vm454 = vcmp.eq.f32.partialorder %v430, 0.0
        %v455 = vand.u32 %v430, 2147483648
        %v456 = vsel %vm454, %v455, %v453
        %v457 = vrsqrt.pop %v431
        %v458 = vmul.f32 %v431, %v457
        %vm459 = vcmp.eq.f32.partialorder %v431, inf
        %v460 = vsel %vm459, %v431, %v458
        %vm461 = vcmp.eq.f32.partialorder %v431, 0.0
        %v462 = vand.u32 %v431, 2147483648
        %v463 = vsel %vm461, %v462, %v460
        %v464 = vrsqrt.pop %v432
        %v465 = vmul.f32 %v432, %v464
        %vm466 = vcmp.eq.f32.partialorder %v432, inf
        %v467 = vsel %vm466, %v432, %v465
        %vm468 = vcmp.eq.f32.partialorder %v432, 0.0
        %v469 = vand.u32 %v432, 2147483648
        %v470 = vsel %vm468, %v469, %v467
        %v471 = vrsqrt.pop %v433
        %v472 = vmul.f32 %v433, %v471
        %vm473 = vcmp.eq.f32.partialorder %v433, inf
        %v474 = vsel %vm473, %v433, %v472
        %vm475 = vcmp.eq.f32.partialorder %v433, 0.0
        %v476 = vand.u32 %v433, 2147483648
        %v477 = vsel %vm475, %v476, %v474
        %v478 = vrsqrt.pop %v434
        %v479 = vmul.f32 %v434, %v478
        %vm480 = vcmp.eq.f32.partialorder %v434, inf
        %v481 = vsel %vm480, %v434, %v479
        %vm482 = vcmp.eq.f32.partialorder %v434, 0.0
        %v483 = vand.u32 %v434, 2147483648
        %v484 = vsel %vm482, %v483, %v481
        %v485 = vrsqrt.pop %v435
        %v486 = vmul.f32 %v435, %v485
        %vm487 = vcmp.eq.f32.partialorder %v435, inf
        %v488 = vsel %vm487, %v435, %v486
        %vm489 = vcmp.eq.f32.partialorder %v435, 0.0
        %v490 = vand.u32 %v435, 2147483648
        %v491 = vsel %vm489, %v490, %v488
        %s492 = scalar_lea.vmem %s131, 768 [#allocation2]
        %v493 = vld [vmem:[%s492] sm:$0xff]
        %v494 = vld [vmem:[%s492 + $0x8] sm:$0xff]
        %v495 = vld [vmem:[%s492 + $0x10] sm:$0xff]
        %v496 = vld [vmem:[%s492 + $0x18] sm:$0xff]
        %v497 = vld [vmem:[%s492 + $0x20] sm:$0xff]
        %v498 = vld [vmem:[%s492 + $0x28] sm:$0xff]
        %v499 = vld [vmem:[%s492 + $0x30] sm:$0xff]
        %v500 = vld [vmem:[%s492 + $0x38] sm:$0xff]
        %s501 = scalar_lea.vmem %s131, 832 [#allocation2]
        %v502 = vld [vmem:[%s501] sm:$0xff]
        %v503 = vld [vmem:[%s501 + $0x8] sm:$0xff]
        %v504 = vld [vmem:[%s501 + $0x10] sm:$0xff]
        %v505 = vld [vmem:[%s501 + $0x18] sm:$0xff]
        %v506 = vld [vmem:[%s501 + $0x20] sm:$0xff]
        %v507 = vld [vmem:[%s501 + $0x28] sm:$0xff]
        %v508 = vld [vmem:[%s501 + $0x30] sm:$0xff]
        %v509 = vld [vmem:[%s501 + $0x38] sm:$0xff]
        %s510 = scalar_lea.vmem %s131, 896 [#allocation2]
        %v511 = vld [vmem:[%s510] sm:$0xff]
        %v512 = vld [vmem:[%s510 + $0x8] sm:$0xff]
        %v513 = vld [vmem:[%s510 + $0x10] sm:$0xff]
        %v514 = vld [vmem:[%s510 + $0x18] sm:$0xff]
        %v515 = vld [vmem:[%s510 + $0x20] sm:$0xff]
        %v516 = vld [vmem:[%s510 + $0x28] sm:$0xff]
        %v517 = vld [vmem:[%s510 + $0x30] sm:$0xff]
        %v518 = vld [vmem:[%s510 + $0x38] sm:$0xff]
        %s527 = scalar_lea.vmem %s131, 960 [#allocation2]
        %v528 = vld [vmem:[%s527] sm:$0xff]
        %v529 = vld [vmem:[%s527 + $0x8] sm:$0xff]
        %v530 = vld [vmem:[%s527 + $0x10] sm:$0xff]
        %v531 = vld [vmem:[%s527 + $0x18] sm:$0xff]
        %v532 = vld [vmem:[%s527 + $0x20] sm:$0xff]
        %v533 = vld [vmem:[%s527 + $0x28] sm:$0xff]
        %v534 = vld [vmem:[%s527 + $0x30] sm:$0xff]
        %v535 = vld [vmem:[%s527 + $0x38] sm:$0xff]
        %vm544 = vcmp.ne.f32.partialorder %v502, 0.0
        %vm545 = vcmp.ne.f32.partialorder %v503, 0.0
        %vm546 = vcmp.ne.f32.partialorder %v504, 0.0
        %vm547 = vcmp.ne.f32.partialorder %v505, 0.0
        %vm548 = vcmp.ne.f32.partialorder %v506, 0.0
        %vm549 = vcmp.ne.f32.partialorder %v507, 0.0
        %vm550 = vcmp.ne.f32.partialorder %v508, 0.0
        %vm551 = vcmp.ne.f32.partialorder %v509, 0.0
        %v552 = vsel %vm544, %v502, 1.0
        %v553 = vsel %vm545, %v503, 1.0
        %v554 = vsel %vm546, %v504, 1.0
        %v555 = vsel %vm547, %v505, 1.0
        %v556 = vsel %vm548, %v506, 1.0
        %v557 = vsel %vm549, %v507, 1.0
        %v558 = vsel %vm550, %v508, 1.0
        %v559 = vsel %vm551, %v509, 1.0
        %v560 = vsub.f32 %v295, %v493
        %v561 = vsub.f32 %v302, %v494
        %v562 = vsub.f32 %v309, %v495
        %v563 = vsub.f32 %v316, %v496
        %v564 = vsub.f32 %v323, %v497
        %v565 = vsub.f32 %v330, %v498
        %v566 = vsub.f32 %v337, %v499
        %v567 = vsub.f32 %v344, %v500
        %v568 = vrcp.pop %v552
        %v569 = vmul.f32 %v560, %v568
        %v570 = vrcp.pop %v553
        %v571 = vmul.f32 %v561, %v570
        %v572 = vrcp.pop %v554
        %v573 = vmul.f32 %v562, %v572
        %v574 = vrcp.pop %v555
        %v575 = vmul.f32 %v563, %v574
        %v576 = vrcp.pop %v556
        %v577 = vmul.f32 %v564, %v576
        %v578 = vrcp.pop %v557
        %v579 = vmul.f32 %v565, %v578
        %v580 = vrcp.pop %v558
        %v581 = vmul.f32 %v566, %v580
        %v582 = vrcp.pop %v559
        %v583 = vmul.f32 %v567, %v582
        %v584 = vmul.f32 %v569, %v569
        %v585 = vmul.f32 %v571, %v571
        %v586 = vmul.f32 %v573, %v573
        %v587 = vmul.f32 %v575, %v575
        %v588 = vmul.f32 %v577, %v577
        %v589 = vmul.f32 %v579, %v579
        %v590 = vmul.f32 %v581, %v581
        %v591 = vmul.f32 %v583, %v583
        %v592 = vsub.f32 %v442, %v493
        %v593 = vsub.f32 %v449, %v494
        %v594 = vsub.f32 %v456, %v495
        %v595 = vsub.f32 %v463, %v496
        %v596 = vsub.f32 %v470, %v497
        %v597 = vsub.f32 %v477, %v498
        %v598 = vsub.f32 %v484, %v499
        %v599 = vsub.f32 %v491, %v500
        %v600 = vmax.f32 %v592, 0.0
        %v601 = vmax.f32 %v593, 0.0
        %v602 = vmax.f32 %v594, 0.0
        %v603 = vmax.f32 %v595, 0.0
        %v604 = vmax.f32 %v596, 0.0
        %v605 = vmax.f32 %v597, 0.0
        %v606 = vmax.f32 %v598, 0.0
        %v607 = vmax.f32 %v599, 0.0
        %v608 = vmul.f32 %v600, %v600
        %v609 = vmul.f32 %v601, %v601
        %v610 = vmul.f32 %v602, %v602
        %v611 = vmul.f32 %v603, %v603
        %v612 = vmul.f32 %v604, %v604
        %v613 = vmul.f32 %v605, %v605
        %v614 = vmul.f32 %v606, %v606
        %v615 = vmul.f32 %v607, %v607
        %v616 = vmul.f32 %v608, %v502
        %v617 = vmul.f32 %v609, %v503
        %v618 = vmul.f32 %v610, %v504
        %v619 = vmul.f32 %v611, %v505
        %v620 = vmul.f32 %v612, %v506
        %v621 = vmul.f32 %v613, %v507
        %v622 = vmul.f32 %v614, %v508
        %v623 = vmul.f32 %v615, %v509
        %vm624 = vcmp.eq.s32.totalorder %v511, 0
        %vm625 = vcmp.eq.s32.totalorder %v512, 0
        %vm626 = vcmp.eq.s32.totalorder %v513, 0
        %vm627 = vcmp.eq.s32.totalorder %v514, 0
        %vm628 = vcmp.eq.s32.totalorder %v515, 0
        %vm629 = vcmp.eq.s32.totalorder %v516, 0
        %vm630 = vcmp.eq.s32.totalorder %v517, 0
        %vm631 = vcmp.eq.s32.totalorder %v518, 0
        %v632 = vsel %vm624, %v584, 0.0
        %v633 = vsel %vm625, %v585, 0.0
        %v634 = vsel %vm626, %v586, 0.0
        %v635 = vsel %vm627, %v587, 0.0
        %v636 = vsel %vm628, %v588, 0.0
        %v637 = vsel %vm629, %v589, 0.0
        %v638 = vsel %vm630, %v590, 0.0
        %v639 = vsel %vm631, %v591, 0.0
        %vm640 = vcmp.eq.s32.totalorder %v511, 1
        %vm641 = vcmp.eq.s32.totalorder %v512, 1
        %vm642 = vcmp.eq.s32.totalorder %v513, 1
        %vm643 = vcmp.eq.s32.totalorder %v514, 1
        %vm644 = vcmp.eq.s32.totalorder %v515, 1
        %vm645 = vcmp.eq.s32.totalorder %v516, 1
        %vm646 = vcmp.eq.s32.totalorder %v517, 1
        %vm647 = vcmp.eq.s32.totalorder %v518, 1
        %v648 = vsel %vm640, %v616, 0.0
        %v649 = vsel %vm641, %v617, 0.0
        %v650 = vsel %vm642, %v618, 0.0
        %v651 = vsel %vm643, %v619, 0.0
        %v652 = vsel %vm644, %v620, 0.0
        %v653 = vsel %vm645, %v621, 0.0
        %v654 = vsel %vm646, %v622, 0.0
        %v655 = vsel %vm647, %v623, 0.0
        %v656 = vadd.f32 %v632, %v648
        %v657 = vadd.f32 %v633, %v649
        %v658 = vadd.f32 %v634, %v650
        %v659 = vadd.f32 %v635, %v651
        %v660 = vadd.f32 %v636, %v652
        %v661 = vadd.f32 %v637, %v653
        %v662 = vadd.f32 %v638, %v654
        %v663 = vadd.f32 %v639, %v655
        %v664 = vld [vmem:[%s149] sm:$0xff]
        %v665 = vld [vmem:[%s149 + $0x8] sm:$0xff]
        %v666 = vld [vmem:[%s149 + $0x10] sm:$0xff]
        %v667 = vld [vmem:[%s149 + $0x18] sm:$0xff]
        %v668 = vld [vmem:[%s149 + $0x20] sm:$0xff]
        %v669 = vld [vmem:[%s149 + $0x28] sm:$0xff]
        %v670 = vld [vmem:[%s149 + $0x30] sm:$0xff]
        %v671 = vld [vmem:[%s149 + $0x38] sm:$0xff]
        %vm672 = vcmp.eq.s32.totalorder %v528, 0
        %vm673 = vcmp.eq.s32.totalorder %v529, 0
        %vm674 = vcmp.eq.s32.totalorder %v530, 0
        %vm675 = vcmp.eq.s32.totalorder %v531, 0
        %vm676 = vcmp.eq.s32.totalorder %v532, 0
        %vm677 = vcmp.eq.s32.totalorder %v533, 0
        %vm678 = vcmp.eq.s32.totalorder %v534, 0
        %vm679 = vcmp.eq.s32.totalorder %v535, 0
        %v680 = vsel %vm672, %v656, 0.0
        %v681 = vsel %vm673, %v657, 0.0
        %v682 = vsel %vm674, %v658, 0.0
        %v683 = vsel %vm675, %v659, 0.0
        %v684 = vsel %vm676, %v660, 0.0
        %v685 = vsel %vm677, %v661, 0.0
        %v686 = vsel %vm678, %v662, 0.0
        %v687 = vsel %vm679, %v663, 0.0
        %v688 = vadd.f32 %v664, %v680
        %v689 = vadd.f32 %v665, %v681
        %v690 = vadd.f32 %v666, %v682
        %v691 = vadd.f32 %v667, %v683
        %v692 = vadd.f32 %v668, %v684
        %v693 = vadd.f32 %v669, %v685
        %v694 = vadd.f32 %v670, %v686
        %v695 = vadd.f32 %v671, %v687
        %696 = vst [vmem:[%s149] sm:$0xff] %v688
        %697 = vst [vmem:[%s149 + $0x8] sm:$0xff] %v689
        %698 = vst [vmem:[%s149 + $0x10] sm:$0xff] %v690
        %699 = vst [vmem:[%s149 + $0x18] sm:$0xff] %v691
        %700 = vst [vmem:[%s149 + $0x20] sm:$0xff] %v692
        %701 = vst [vmem:[%s149 + $0x28] sm:$0xff] %v693
        %702 = vst [vmem:[%s149 + $0x30] sm:$0xff] %v694
        %703 = vst [vmem:[%s149 + $0x38] sm:$0xff] %v695
        %s704 = scalar_lea.vmem %s149, 64 [#allocation5]
        %v705 = vld [vmem:[%s704] sm:$0xff]
        %v706 = vld [vmem:[%s704 + $0x8] sm:$0xff]
        %v707 = vld [vmem:[%s704 + $0x10] sm:$0xff]
        %v708 = vld [vmem:[%s704 + $0x18] sm:$0xff]
        %v709 = vld [vmem:[%s704 + $0x20] sm:$0xff]
        %v710 = vld [vmem:[%s704 + $0x28] sm:$0xff]
        %v711 = vld [vmem:[%s704 + $0x30] sm:$0xff]
        %v712 = vld [vmem:[%s704 + $0x38] sm:$0xff]
        %vm713 = vcmp.eq.s32.totalorder %v528, 1
        %vm714 = vcmp.eq.s32.totalorder %v529, 1
        %vm715 = vcmp.eq.s32.totalorder %v530, 1
        %vm716 = vcmp.eq.s32.totalorder %v531, 1
        %vm717 = vcmp.eq.s32.totalorder %v532, 1
        %vm718 = vcmp.eq.s32.totalorder %v533, 1
        %vm719 = vcmp.eq.s32.totalorder %v534, 1
        %vm720 = vcmp.eq.s32.totalorder %v535, 1
        %v721 = vsel %vm713, %v656, 0.0
        %v722 = vsel %vm714, %v657, 0.0
        %v723 = vsel %vm715, %v658, 0.0
        %v724 = vsel %vm716, %v659, 0.0
        %v725 = vsel %vm717, %v660, 0.0
        %v726 = vsel %vm718, %v661, 0.0
        %v727 = vsel %vm719, %v662, 0.0
        %v728 = vsel %vm720, %v663, 0.0
        %v729 = vadd.f32 %v705, %v721
        %v730 = vadd.f32 %v706, %v722
        %v731 = vadd.f32 %v707, %v723
        %v732 = vadd.f32 %v708, %v724
        %v733 = vadd.f32 %v709, %v725
        %v734 = vadd.f32 %v710, %v726
        %v735 = vadd.f32 %v711, %v727
        %v736 = vadd.f32 %v712, %v728
        %737 = vst [vmem:[%s704] sm:$0xff] %v729
        %738 = vst [vmem:[%s704 + $0x8] sm:$0xff] %v730
        %739 = vst [vmem:[%s704 + $0x10] sm:$0xff] %v731
        %740 = vst [vmem:[%s704 + $0x18] sm:$0xff] %v732
        %741 = vst [vmem:[%s704 + $0x20] sm:$0xff] %v733
        %742 = vst [vmem:[%s704 + $0x28] sm:$0xff] %v734
        %743 = vst [vmem:[%s704 + $0x30] sm:$0xff] %v735
        %744 = vst [vmem:[%s704 + $0x38] sm:$0xff] %v736
        %s745 = sand.u32 %s66, 1
        %s746 = scalar_lea.sflag [#allocation4], %s745
        %s747 = sand.u32 %s66, 1
        %s748 = smul.addr %s747, 128
        %s749 = scalar_lea.vmem [#allocation5], %s748
        // Predicated region
        $region33: #{tpu_custom_call.1} parent=23 // pred_check
          %p750 = pneg %p76
        $region34: #{tpu_custom_call.1} parent=23 // pred_check_branch
          %752 = sbr.rel (%p750) target = $region36
        $region35: #{tpu_custom_call.1} parent=23 // pred_region
          %s754 = ssub.s32 2048, 2048
          %755 = vsyncadd %s746, %s754
          %s756 = smul.addr %s22, 16
          %s757 = smul.addr %s756, 128
          %s758 = scalar_lea.hbm %s1, %s757
          %s759 = sshll.u32 %s749, 4
          %s760 = int_to_ptr.vmem [resolvable:$true] %s759
          %765 = dma.vmem_to_hbm [thread:$0]  %s760, 2048, %s758, %s746, 1024, 1024, 64
        $region36: #{tpu_custom_call.1} parent=23 // pred_fallthru
          _
      $region24: #{tpu_custom_call.1} parent=5 // pred_fallthru
        _
      %p766 = scmp.le.s32.totalorder 2, %s13
      // Predicated region
      $region37: #{tpu_custom_call.1} parent=5 // pred_check
        %p767 = pneg %p766
      $region38: #{tpu_custom_call.1} parent=5 // pred_check_branch
        %769 = sbr.rel (%p767) target = $region40
      $region39: #{tpu_custom_call.1} parent=5 // pred_region
        %s770 = ssub.s32 %s13, 2
        // Predicated region
        $region41: #{tpu_custom_call.1} parent=39 // pred_check
          %p771 = pneg %p82
        $region42: #{tpu_custom_call.1} parent=39 // pred_check_branch
          %773 = sbr.rel (%p771) target = $region44
        $region43: #{tpu_custom_call.1} parent=39 // pred_region
          %s774 = sand.u32 %s67, 1
          %s775 = scalar_lea.sflag [#allocation4], %s774
          %s776 = sand.u32 %s67, 1
          %s777 = smul.addr %s776, 128
          %s778 = scalar_lea.vmem [#allocation5], %s777
          %779 = dma.done %s775, 2048
        $region44: #{tpu_custom_call.1} parent=39 // pred_fallthru
          _
      $region40: #{tpu_custom_call.1} parent=5 // pred_fallthru
        _
    $region6: #{tpu_custom_call.1} parent=1 // loop_footer
      %s17 = sadd.s32 1, %s13
    $region7: #{tpu_custom_call.1} parent=1 // loop_footer_branch
      %12 = sbr.rel target = $region3
    $region8: #{tpu_custom_call.1} parent=1 // loop_exit
      _
    %780 = vsyncpa [#allocation3], 1
    %s781 = scalar_lea.sflag [#allocation3], 1
    %782 = vsyncpa %s781, 1
    %783 = vsyncpa [#allocation4], 1
    %s784 = scalar_lea.sflag [#allocation4], 1
    %785 = vsyncpa %s784, 1

</llo_original>
